<compile_context>
chip_gen: v5e
topology: v5e:2x2
jax: 0.10.0
libtpu: 0.0.40
codegen_flags: <defaults>
</compile_context>

<pallas_src>
import math
import functools

import jax
import jax.numpy as jnp
from jax import lax
from jax.experimental import pallas as pl
from jax.experimental.pallas import tpu as pltpu


@functools.lru_cache(maxsize=None)
def _vmem_limit_bytes():
    """Generation-aware scoped-VMEM budget (~96 MiB on 128-MiB parts, ~48 MiB on v7x)."""
    try:
        cap = int(getattr(pltpu.get_tpu_info(), "vmem_capacity_bytes", 128 << 20))
    except Exception:
        cap = 128 << 20
    return min(96 << 20, max(32 << 20, (cap * 3) // 4))


def _row_tile_cap():
    # bigger row tiles on 128-MiB-VMEM parts; conservative on v7x's 64 MiB
    return 1024 if _vmem_limit_bytes() >= (64 << 20) else 512


def _row_tile(n, cap=None):
    """Largest divisor of n <= cap, preferring multiples of 8.
    TODO(synk): for ragged n, switch to pl.cdiv grids with a masked last tile."""
    cap = min(n, cap or _row_tile_cap())
    for t in range(cap, 0, -1):
        if n % t == 0 and t % 8 == 0:
            return t
    for t in range(cap, 0, -1):
        if n % t == 0:
            return t
    return n


def _layer_norm(x, gamma, beta, eps=1e-5):
    mu = jnp.mean(x, axis=-1, keepdims=True)
    var = jnp.mean((x - mu) ** 2, axis=-1, keepdims=True)
    return (x - mu) * lax.rsqrt(var + eps) * gamma + beta


# ----------------------------------------------------------------------------
# Kernel 1: QKV projection on the (B*T, D) slab. bf16 matmul, f32 accum,
# bf16 output (consumer is the bf16 attention kernel).
# ----------------------------------------------------------------------------
def qkv_proj_kernel(x_ref, w_ref, b_ref, o_ref):
    o_ref[...] = (jnp.dot(x_ref[...], w_ref[...],
                          preferred_element_type=jnp.float32)
                  + b_ref[...]).astype(o_ref.dtype)


def qkv_proj(x2d, wqkv, bqkv):
    BT, D = x2d.shape
    N3 = wqkv.shape[1]
    tm = _row_tile(BT)
    flops = 2 * BT * D * N3
    bytes_acc = BT * D * 2 + D * N3 * 2 + N3 * 4 + BT * N3 * 2
    return pl.pallas_call(
        qkv_proj_kernel,
        out_shape=jax.ShapeDtypeStruct((BT, N3), jnp.bfloat16),
        grid=(BT // tm,),
        in_specs=[
            pl.BlockSpec((tm, D), lambda r: (r, 0)),
            pl.BlockSpec((D, N3), lambda r: (0, 0)),
            pl.BlockSpec((1, N3), lambda r: (0, 0)),
        ],
        out_specs=pl.BlockSpec((tm, N3), lambda r: (r, 0)),
        compiler_params=pltpu.CompilerParams(
            dimension_semantics=("parallel",),
            vmem_limit_bytes=_vmem_limit_bytes()),
        cost_estimate=pl.CostEstimate(flops=flops, transcendentals=0,
                                      bytes_accessed=bytes_acc),
    )(x2d.astype(jnp.bfloat16), wqkv.astype(jnp.bfloat16), bqkv)


# ----------------------------------------------------------------------------
# Kernel 2: causal attention, gridded over (batch, head); q/k/v tiles are read
# straight out of the (B*T, 3D) qkv slab via column block offsets and the
# output is written head-merged into a (B*T, D) bf16 slab.
# ----------------------------------------------------------------------------
def attention_kernel(q_ref, k_ref, v_ref, o_ref, *, scale):
    q = q_ref[...] * scale                      # fold 1/sqrt(hd) into q (bf16)
    k = k_ref[...]
    v = v_ref[...]
    # TODO(synk): flash-tile over KV blocks (online softmax) for production T.
    s = lax.dot_general(q, k, (((1,), (1,)), ((), ())),
                        preferred_element_type=jnp.float32)          # (T, T)
    T = s.shape[0]
    rows = lax.broadcasted_iota(jnp.int32, (T, T), 0)
    cols = lax.broadcasted_iota(jnp.int32, (T, T), 1)
    s = jnp.where(cols <= rows, s, -1e30)                            # f32 mask
    m = jnp.max(s, axis=-1, keepdims=True)
    p = jnp.exp(s - m)
    p = p * pl.reciprocal(jnp.sum(p, axis=-1, keepdims=True), approx=True)
    o_ref[...] = jnp.dot(p.astype(v.dtype), v,
                         preferred_element_type=jnp.float32).astype(o_ref.dtype)


def causal_attention(qkv, *, B, T, H, hd):
    """qkv: (B*T, 3*H*hd) bf16 with columns [q_h0..q_h{H-1}, k_*, v_*]."""
    D = H * hd
    scale = 1.0 / math.sqrt(hd)
    flops = 4 * B * H * T * T * hd
    bytes_acc = 3 * B * T * D * 2 + B * T * D * 2
    return pl.pallas_call(
        functools.partial(attention_kernel, scale=scale),
        out_shape=jax.ShapeDtypeStruct((B * T, D), jnp.bfloat16),
        grid=(B, H),
        in_specs=[
            pl.BlockSpec((T, hd), lambda b, h: (b, h)),             # q head h
            pl.BlockSpec((T, hd), lambda b, h: (b, H + h)),         # k head h
            pl.BlockSpec((T, hd), lambda b, h: (b, 2 * H + h)),     # v head h
        ],
        out_specs=pl.BlockSpec((T, hd), lambda b, h: (b, h)),
        compiler_params=pltpu.CompilerParams(
            dimension_semantics=("parallel", "parallel"),
            vmem_limit_bytes=_vmem_limit_bytes()),
        cost_estimate=pl.CostEstimate(flops=flops, transcendentals=B * H * T * T,
                                      bytes_accessed=bytes_acc),
    )(qkv, qkv, qkv)


# ----------------------------------------------------------------------------
# Kernel 3: output projection + residual + LN + FFN(GELU) + residual + LN.
# Runs on the (B*T, D) slab; bf16 matmuls, f32 LayerNorm / elementwise.
# ----------------------------------------------------------------------------
def mlp_kernel(xres_ref, attn_ref, wo_ref, bo_ref, g1_ref, b1_ref,
               w1_ref, bf1_ref, w2_ref, bf2_ref, g2_ref, b2_ref, o_ref):
    a = jnp.dot(attn_ref[...], wo_ref[...],
                preferred_element_type=jnp.float32) + bo_ref[...]
    h = _layer_norm(xres_ref[...] + a, g1_ref[...], b1_ref[...])      # f32
    f = jnp.dot(h.astype(jnp.bfloat16), w1_ref[...],
                preferred_element_type=jnp.float32) + bf1_ref[...]
    f = jax.nn.gelu(f, approximate=True)   # TODO(synk): activation of the external encoder is unknown
    f = jnp.dot(f.astype(jnp.bfloat16), w2_ref[...],
                preferred_element_type=jnp.float32) + bf2_ref[...]
    o_ref[...] = _layer_norm(h + f, g2_ref[...], b2_ref[...]).astype(o_ref.dtype)


def mlp_block(x2d, attn2d, lp):
    BT, D = x2d.shape
    Hf = lp["w1"].shape[1]
    tm = _row_tile(BT)
    bf16 = jnp.bfloat16
    args = [x2d, attn2d,
            lp["wo"].astype(bf16), lp["bo"], lp["g1"], lp["b1"],
            lp["w1"].astype(bf16), lp["bf1"],
            lp["w2"].astype(bf16), lp["bf2"], lp["g2"], lp["b2"]]

    def row_spec(shape):
        return pl.BlockSpec(shape, lambda r: (r, 0))

    def const_spec(shape):
        return pl.BlockSpec(shape, lambda r: (0, 0))

    in_specs = [row_spec((tm, D)), row_spec((tm, D)),
                const_spec((D, D)), const_spec((1, D)),
                const_spec((1, D)), const_spec((1, D)),
                const_spec((D, Hf)), const_spec((1, Hf)),
                const_spec((Hf, D)), const_spec((1, D)),
                const_spec((1, D)), const_spec((1, D))]
    flops = 2 * BT * D * D + 4 * BT * D * Hf
    bytes_acc = BT * D * 6 + (D * D + 2 * D * Hf) * 2 + BT * D * 4
    return pl.pallas_call(
        mlp_kernel,
        out_shape=jax.ShapeDtypeStruct((BT, D), jnp.float32),
        grid=(BT // tm,),
        in_specs=in_specs,
        out_specs=row_spec((tm, D)),
        compiler_params=pltpu.CompilerParams(
            dimension_semantics=("parallel",),
            vmem_limit_bytes=_vmem_limit_bytes()),
        cost_estimate=pl.CostEstimate(flops=flops, transcendentals=BT * Hf,
                                      bytes_accessed=bytes_acc),
    )(*args)


# ----------------------------------------------------------------------------
# Kernel 4: all K codebook heads fused into one (D, K*card) matmul per row
# tile (grid only over rows -> activation slab streamed once, MXU N = K*card).
# Per-codebook softmax over exact f32 division on static lane-aligned slices.
# ----------------------------------------------------------------------------
def heads_softmax_kernel(x_ref, w_ref, b_ref, o_ref, *, K, card):
    logits = jnp.dot(x_ref[...], w_ref[...],
                     preferred_element_type=jnp.float32) + b_ref[...]  # (tm, K*card)
    for k in range(K):                       # static unroll; card is 128-aligned
        seg = logits[:, k * card:(k + 1) * card]
        m = jnp.max(seg, axis=-1, keepdims=True)
        e = jnp.exp(seg - m)
        s = jnp.sum(e, axis=-1, keepdims=True)
        o_ref[:, k * card:(k + 1) * card] = (e / s).astype(o_ref.dtype)


def heads_softmax(out2d, head_w, head_b):
    BT, D = out2d.shape
    K, _, card = head_w.shape
    # one-time weight re-layout (XLA side, weights only): (K, D, card) -> (D, K*card)
    w2 = head_w.transpose(1, 0, 2).reshape(D, K * card).astype(jnp.bfloat16)
    b2 = head_b.reshape(1, K * card)
    tm = _row_tile(BT)
    flops = 2 * BT * D * K * card
    bytes_acc = BT * D * 2 + D * K * card * 2 + K * card * 4 + BT * K * card * 4
    # TODO(synk): for very large K*card, add a head-axis grid dim (column tiles).
    return pl.pallas_call(
        functools.partial(heads_softmax_kernel, K=K, card=card),
        out_shape=jax.ShapeDtypeStruct((BT, K * card), jnp.float32),
        grid=(BT // tm,),
        in_specs=[
            pl.BlockSpec((tm, D), lambda r: (r, 0)),
            pl.BlockSpec((D, K * card), lambda r: (0, 0)),
            pl.BlockSpec((1, K * card), lambda r: (0, 0)),
        ],
        out_specs=pl.BlockSpec((tm, K * card), lambda r: (r, 0)),
        compiler_params=pltpu.CompilerParams(
            dimension_semantics=("parallel",),
            vmem_limit_bytes=_vmem_limit_bytes()),
        cost_estimate=pl.CostEstimate(flops=flops, transcendentals=BT * K * card,
                                      bytes_accessed=bytes_acc),
    )(out2d.astype(jnp.bfloat16), w2, b2)


# ----------------------------------------------------------------------------
# Parameters + forward glue
# ----------------------------------------------------------------------------
def init_params(key, *, n_q, card, dim, num_heads, hidden):
    ks = jax.random.split(key, 12)
    u = lambda k, shape, scale: jax.random.uniform(k, shape, jnp.float32, -scale, scale)
    s_d = 1.0 / math.sqrt(dim)
    s_h = 1.0 / math.sqrt(hidden)
    return {
        "emb": 0.02 * jax.random.normal(ks[0], (n_q, card + 1, dim), jnp.float32),
        "layer": {
            "g1": jnp.ones((1, dim), jnp.float32), "b1": jnp.zeros((1, dim), jnp.float32),
            "wqkv": u(ks[1], (dim, 3 * dim), s_d), "bqkv": u(ks[2], (1, 3 * dim), s_d),
            "wo": u(ks[3], (dim, dim), s_d), "bo": u(ks[4], (1, dim), s_d),
            "g2": jnp.ones((1, dim), jnp.float32), "b2": jnp.zeros((1, dim), jnp.float32),
            "w1": u(ks[5], (dim, hidden), s_d), "bf1": u(ks[6], (1, hidden), s_d),
            "w2": u(ks[7], (hidden, dim), s_h), "bf2": u(ks[8], (1, dim), s_h),
        },
        # pre-transposed head weights (D, card) so the kernel does x @ w directly
        "head_w": u(ks[9], (n_q, dim, card), s_d),
        "head_b": u(ks[10], (n_q, 1, card), s_d),
    }


def lm_model_forward(params, indices, states=None, offset=0, *, num_heads=2):
    """indices: [B, n_q, T] int32, values in [0, card] (0 = missing)."""
    B, K, T = indices.shape
    emb = params["emb"]                       # (K, card+1, D)
    Kc, D = emb.shape[1], emb.shape[2]
    card = params["head_w"].shape[2]

    # fused embedding sum: single gather on the flattened (K*(card+1), D) table
    # TODO(synk): for large K/T, move this gather+sum into a scalar-prefetched
    # Pallas DMA-gather kernel to avoid materializing the (B, K, T, D) tensor.
    flat_idx = indices + (jnp.arange(K, dtype=indices.dtype) * Kc)[None, :, None]
    gathered = jnp.take(emb.reshape(K * Kc, D), flat_idx, axis=0)     # (B, K, T, D)
    input_ = jnp.sum(gathered, axis=1)                                # (B, T, D)

    # sinusoidal positional embedding with streaming offset
    half = D // 2
    pos = (jnp.arange(T, dtype=jnp.float32) + float(offset))[:, None]
    adim = jnp.arange(half, dtype=jnp.float32)[None, :]
    phase = pos / (10000.0 ** (adim / max(half - 1, 1)))
    pos_emb = jnp.concatenate([jnp.cos(phase), jnp.sin(phase)], axis=-1)   # (T, D)
    x = input_ + pos_emb[None]

    lp = params["layer"]
    H = num_heads
    hd = D // H
    x2d = x.reshape(B * T, D)

    # --- single causal post-LN encoder layer -------------------------------
    qkv = qkv_proj(x2d, lp["wqkv"], lp["bqkv"])                 # (B*T, 3D) bf16
    attn2d = causal_attention(qkv, B=B, T=T, H=H, hd=hd)        # (B*T, D)  bf16
    out2d = mlp_block(x2d, attn2d, lp)                          # (B*T, D)  f32

    probs2d = heads_softmax(out2d, params["head_w"], params["head_b"])  # (BT, K*card) f32
    # literal PyTorch code path: stack -> [K, B, T, card]; permute(0,3,1,2) -> [K, card, B, T]
    probs = jnp.transpose(probs2d.reshape(B, T, K, card), (2, 3, 0, 1))

    # TODO(synk): streaming decode state of StreamingTransformerEncoder is external;
    # return the last time step as a placeholder state.
    new_states = [out2d.reshape(B, T, D)[:, -1:, :]]
    return probs, new_states, offset + T


if __name__ == "__main__":
    # demo shapes: head_dim = 128 (lane-aligned head tiles), contractions 256-aligned
    B, n_q, T = 2, 4, 16
    card, dim, num_heads, hidden = 256, 256, 2, 512

    key = jax.random.PRNGKey(0)
    pkey, ikey = jax.random.split(key)
    params = init_params(pkey, n_q=n_q, card=card, dim=dim,
                         num_heads=num_heads, hidden=hidden)
    indices = jax.random.randint(ikey, (B, n_q, T), 0, card + 1, dtype=jnp.int32)

    probs, states, offset = lm_model_forward(params, indices, states=None, offset=0,
                                             num_heads=num_heads)
    probs = jax.block_until_ready(probs)

    assert probs.shape == (n_q, card, B, T), probs.shape
    assert bool(jnp.all(jnp.isfinite(probs)))
    # exact softmax over the card axis sums to ~1
    assert jnp.allclose(jnp.sum(probs, axis=1), 1.0, atol=1e-3)
    print("KERNEL_OK")
</pallas_src>

<mosaic_0001>
module attributes {stable_mosaic.version = 11 : i64} {
  func.func @qkv_proj_kernel(%arg0: i32, %arg1: memref<32x256xbf16, #tpu.memory_space<vmem>>, %arg2: memref<256x768xbf16, #tpu.memory_space<vmem>>, %arg3: memref<1x768xf32, #tpu.memory_space<vmem>>, %arg4: memref<32x768xbf16, #tpu.memory_space<vmem>>) attributes {dimension_semantics = [#tpu.dimension_semantics<parallel>], iteration_bounds = array<i64: 1>, scalar_prefetch = 0 : i64, scratch_operands = 0 : i64, tpu.core_type = #tpu.core_type<tc>, window_params = [{transform_indices = @transform_0, window_bounds = array<i64: 32, 256>}, {pipeline_mode = #tpu.pipeline_mode<synchronous>, transform_indices = @transform_1, window_bounds = array<i64: 256, 768>}, {pipeline_mode = #tpu.pipeline_mode<synchronous>, transform_indices = @transform_2, window_bounds = array<i64: 1, 768>}, {transform_indices = @transform_3, window_bounds = array<i64: 32, 768>}]} {
    %c0 = arith.constant 0 : index
    %c0_0 = arith.constant 0 : index
    %0 = vector.load %arg1[%c0, %c0_0] : memref<32x256xbf16, #tpu.memory_space<vmem>>, vector<32x256xbf16>
    %c0_1 = arith.constant 0 : index
    %c0_2 = arith.constant 0 : index
    %1 = vector.load %arg2[%c0_1, %c0_2] : memref<256x768xbf16, #tpu.memory_space<vmem>>, vector<256x768xbf16>
    %cst = arith.constant dense<0.000000e+00> : vector<32x768xf32>
    %2 = tpu.matmul %0, %1, %cst {dimension_numbers = #tpu.dot_dimension_numbers<[1], [0], [0], [1], [0, 0, 1, 1], [], []>} : vector<32x256xbf16>, vector<256x768xbf16>, vector<32x768xf32> -> vector<32x768xf32>
    %c0_3 = arith.constant 0 : index
    %c0_4 = arith.constant 0 : index
    %3 = vector.load %arg3[%c0_3, %c0_4] : memref<1x768xf32, #tpu.memory_space<vmem>>, vector<1x768xf32>
    %4 = vector.broadcast %3 : vector<1x768xf32> to vector<32x768xf32>
    %5 = arith.addf %2, %4 : vector<32x768xf32>
    %6 = arith.truncf %5 : vector<32x768xf32> to vector<32x768xbf16>
    %c0_5 = arith.constant 0 : index
    %c0_6 = arith.constant 0 : index
    %7 = vector.load %arg4[%c0_5, %c0_6] : memref<32x768xbf16, #tpu.memory_space<vmem>>, vector<32x768xbf16>
    tpu.vector_store %arg4[%c0_5, %c0_6], %6 {strides = array<i32>} : memref<32x768xbf16, #tpu.memory_space<vmem>>, vector<32x768xbf16>,
    return
  }
  func.func @transform_0(%arg0: i32) -> (i32, i32) {
    %c0_i32 = arith.constant 0 : i32
    %c0_i32_0 = arith.constant 0 : i32
    return %arg0, %c0_i32 : i32, i32
  }
  func.func @transform_1(%arg0: i32) -> (i32, i32) {
    %c0_i32 = arith.constant 0 : i32
    %c0_i32_0 = arith.constant 0 : i32
    %c0_i32_1 = arith.constant 0 : i32
    return %c0_i32, %c0_i32_0 : i32, i32
  }
  func.func @transform_2(%arg0: i32) -> (i32, i32) {
    %c0_i32 = arith.constant 0 : i32
    %c0_i32_0 = arith.constant 0 : i32
    %c0_i32_1 = arith.constant 0 : i32
    return %c0_i32, %c0_i32_0 : i32, i32
  }
  func.func @transform_3(%arg0: i32) -> (i32, i32) {
    %c0_i32 = arith.constant 0 : i32
    %c0_i32_0 = arith.constant 0 : i32
    return %arg0, %c0_i32 : i32, i32
  }
}

</mosaic_0001>

<llo_original>
// kernel: tpu_custom_call.1
$region0: #{tpu_custom_call.1}
  #allocation0 [shape = 'u32[]', space=smem, size = 0x4, offset = 0x4, fixed_abs, tag = 'smem constant byte address 0x4 - core index']
  #allocation1 [shape = 'u32[72,128]{1,0:T(1,128)}', space=vmem, size = 0x9000, scoped, tag = 'internal scratch']
  %s0 = inlined_call_operand.hbm [shape: bf16[32,256], index: 0, kind: input, shape index: {}]
  %s1 = inlined_call_operand.hbm [shape: bf16[256,768], index: 1, kind: input, shape index: {}]
  %s2 = inlined_call_operand.hbm [shape: f32[1,768], index: 2, kind: input, shape index: {}]
  %s3 = inlined_call_operand.hbm [shape: bf16[32,768], index: 3, kind: output, shape index: {}]
  %s4 = sld [smem:[#allocation0]]
  $region34: #{tpu_custom_call.1} parent=0
    _
  %s6 = ssub.s32 1, %s4
  %s7 = scalar_select 0, %s6, %s4
  $region1: #{tpu_custom_call.1} parent=0
    #allocation2 [shape = 'u8[16384]{0}', space=vmem, size = 0x4000, scoped, tag = 'input window, operand 0, single buffered']
    #allocation3 [shape = 's32[1]{0}', space=sflag, size = 0x4, scoped, tag = 'scoped memory for tpu_custom_call.1']
    #allocation4 [shape = 's32[1]{0}', space=sflag, size = 0x4, scoped, tag = 'scoped memory for tpu_custom_call.1']
    #allocation5 [shape = 'u8[393216]{0}', space=vmem, size = 0x60000, scoped, tag = 'input window, operand 1, single buffered']
    #allocation6 [shape = 's32[1]{0}', space=sflag, size = 0x4, scoped, tag = 'scoped memory for tpu_custom_call.1']
    #allocation7 [shape = 'u8[3072]{0}', space=vmem, size = 0xc00, scoped, tag = 'input window, operand 2, single buffered']
    #allocation8 [shape = 'u8[49152]{0}', space=vmem, size = 0xc000, scoped, tag = 'output window, operand 0, single buffered']
    %8 = vsyncpa [#allocation3], 0
    %9 = vsyncpa [#allocation6], 0
    %10 = vsyncpa [#allocation4], 0
    // Predicated region
    $region2: #{tpu_custom_call.1} parent=1 // pred_check
      _
    $region3: #{tpu_custom_call.1} parent=1 // pred_check_branch
      %12 = sbr.rel (0) target = $region5
    $region4: #{tpu_custom_call.1} parent=1 // pred_region
      %14 = vsyncadd [#allocation3], 0
      %s15 = sshll.u32 %s0, 4
      %s16 = int_to_ptr.hbm [resolvable:$true] %s15
      %s17 = sshll.u32 [#allocation2], 4
      %s18 = int_to_ptr.vmem [resolvable:$true] %s17
      %23 = dma.hbm_to_vmem [thread:$0]  %s16, 512, %s18, [#allocation3], 128, 128, 8
    $region5: #{tpu_custom_call.1} parent=1 // pred_fallthru
      _
    // Predicated region
    $region6: #{tpu_custom_call.1} parent=1 // pred_check
      _
    $region7: #{tpu_custom_call.1} parent=1 // pred_check_branch
      %25 = sbr.rel (0) target = $region9
    $region8: #{tpu_custom_call.1} parent=1 // pred_region
      %27 = vsyncadd [#allocation6], 0
      %s28 = sshll.u32 %s1, 4
      %s29 = int_to_ptr.hbm [resolvable:$true] %s28
      %s30 = sshll.u32 [#allocation5], 4
      %s31 = int_to_ptr.vmem [resolvable:$true] %s30
      %36 = dma.hbm_to_vmem [thread:$0]  %s29, 12288, %s31, [#allocation6], 384, 384, 24
    $region9: #{tpu_custom_call.1} parent=1 // pred_fallthru
      _
    // Predicated region
    $region10: #{tpu_custom_call.1} parent=1 // pred_check
      _
    $region11: #{tpu_custom_call.1} parent=1 // pred_check_branch
      %38 = sbr.rel (0) target = $region13
    $region12: #{tpu_custom_call.1} parent=1 // pred_region
      %40 = vsyncadd [#allocation6], 0
      %s42 = sshll.u32 %s2, 4
      %s43 = int_to_ptr.hbm [resolvable:$true] %s42
      %s44 = sshll.u32 [#allocation7], 4
      %s45 = int_to_ptr.vmem [resolvable:$true] %s44
      %47 = dma.hbm_to_vmem [thread:$0]  %s43, 96, %s45, [#allocation6]
    $region13: #{tpu_custom_call.1} parent=1 // pred_fallthru
      _
    // Predicated region
    $region14: #{tpu_custom_call.1} parent=1 // pred_check
      _
    $region15: #{tpu_custom_call.1} parent=1 // pred_check_branch
      %49 = sbr.rel (0) target = $region17
    $region16: #{tpu_custom_call.1} parent=1 // pred_region
      %51 = dma.done [#allocation3], 512
    $region17: #{tpu_custom_call.1} parent=1 // pred_fallthru
      _
    // Predicated region
    $region18: #{tpu_custom_call.1} parent=1 // pred_check
      _
    $region19: #{tpu_custom_call.1} parent=1 // pred_check_branch
      %53 = sbr.rel (0) target = $region21
    $region20: #{tpu_custom_call.1} parent=1 // pred_region
      %55 = dma.done [#allocation6], 12288
    $region21: #{tpu_custom_call.1} parent=1 // pred_fallthru
      _
    // Predicated region
    $region22: #{tpu_custom_call.1} parent=1 // pred_check
      _
    $region23: #{tpu_custom_call.1} parent=1 // pred_check_branch
      %57 = sbr.rel (0) target = $region25
    $region24: #{tpu_custom_call.1} parent=1 // pred_region
      %59 = dma.done [#allocation6], 96
    $region25: #{tpu_custom_call.1} parent=1 // pred_fallthru
      _
    %v60 = vld [vmem:[#allocation2] sm:$0xff]
    %v61 = vld [vmem:[#allocation2 + $0x8] sm:$0xff]
    %v62 = vld [vmem:[#allocation2 + $0x10] sm:$0xff]
    %v63 = vld [vmem:[#allocation2 + $0x18] sm:$0xff]
    %v64 = vld [vmem:[#allocation5] sm:$0xff]
    %v65 = vld [vmem:[#allocation5 + $0x8] sm:$0xff]
    %v66 = vld [vmem:[#allocation5 + $0x10] sm:$0xff]
    %v67 = vld [vmem:[#allocation5 + $0x18] sm:$0xff]
    %v68 = vld [vmem:[#allocation5 + $0x20] sm:$0xff]
    %v69 = vld [vmem:[#allocation5 + $0x28] sm:$0xff]
    %v70 = vld [vmem:[#allocation5 + $0x30] sm:$0xff]
    %v71 = vld [vmem:[#allocation5 + $0x38] sm:$0xff]
    %v72 = vld [vmem:[#allocation5 + $0x40] sm:$0xff]
    %v73 = vld [vmem:[#allocation5 + $0x48] sm:$0xff]
    %v74 = vld [vmem:[#allocation5 + $0x50] sm:$0xff]
    %v75 = vld [vmem:[#allocation5 + $0x58] sm:$0xff]
    %v76 = vld [vmem:[#allocation5 + $0x60] sm:$0xff]
    %v77 = vld [vmem:[#allocation5 + $0x68] sm:$0xff]
    %v78 = vld [vmem:[#allocation5 + $0x70] sm:$0xff]
    %v79 = vld [vmem:[#allocation5 + $0x78] sm:$0xff]
    %v80 = vld [vmem:[#allocation5 + $0x80] sm:$0xff]
    %v81 = vld [vmem:[#allocation5 + $0x88] sm:$0xff]
    %v82 = vld [vmem:[#allocation5 + $0x90] sm:$0xff]
    %v83 = vld [vmem:[#allocation5 + $0x98] sm:$0xff]
    %v84 = vld [vmem:[#allocation5 + $0xa0] sm:$0xff]
    %v85 = vld [vmem:[#allocation5 + $0xa8] sm:$0xff]
    %v86 = vld [vmem:[#allocation5 + $0xb0] sm:$0xff]
    %v87 = vld [vmem:[#allocation5 + $0xb8] sm:$0xff]
    %v88 = vld [vmem:[#allocation5 + $0xc0] sm:$0xff]
    %v89 = vld [vmem:[#allocation5 + $0xc8] sm:$0xff]
    %v90 = vld [vmem:[#allocation5 + $0xd0] sm:$0xff]
    %v91 = vld [vmem:[#allocation5 + $0xd8] sm:$0xff]
    %v92 = vld [vmem:[#allocation5 + $0xe0] sm:$0xff]
    %v93 = vld [vmem:[#allocation5 + $0xe8] sm:$0xff]
    %v94 = vld [vmem:[#allocation5 + $0xf0] sm:$0xff]
    %v95 = vld [vmem:[#allocation5 + $0xf8] sm:$0xff]
    %v96 = vld [vmem:[#allocation5 + $0x100] sm:$0xff]
    %v97 = vld [vmem:[#allocation5 + $0x108] sm:$0xff]
    %v98 = vld [vmem:[#allocation5 + $0x110] sm:$0xff]
    %v99 = vld [vmem:[#allocation5 + $0x118] sm:$0xff]
    %v100 = vld [vmem:[#allocation5 + $0x120] sm:$0xff]
    %v101 = vld [vmem:[#allocation5 + $0x128] sm:$0xff]
    %v102 = vld [vmem:[#allocation5 + $0x130] sm:$0xff]
    %v103 = vld [vmem:[#allocation5 + $0x138] sm:$0xff]
    %v104 = vld [vmem:[#allocation5 + $0x140] sm:$0xff]
    %v105 = vld [vmem:[#allocation5 + $0x148] sm:$0xff]
    %v106 = vld [vmem:[#allocation5 + $0x150] sm:$0xff]
    %v107 = vld [vmem:[#allocation5 + $0x158] sm:$0xff]
    %v108 = vld [vmem:[#allocation5 + $0x160] sm:$0xff]
    %v109 = vld [vmem:[#allocation5 + $0x168] sm:$0xff]
    %v110 = vld [vmem:[#allocation5 + $0x170] sm:$0xff]
    %v111 = vld [vmem:[#allocation5 + $0x178] sm:$0xff]
    %v112 = vld [vmem:[#allocation5 + $0x180] sm:$0xff]
    %v113 = vld [vmem:[#allocation5 + $0x188] sm:$0xff]
    %v114 = vld [vmem:[#allocation5 + $0x190] sm:$0xff]
    %v115 = vld [vmem:[#allocation5 + $0x198] sm:$0xff]
    %v116 = vld [vmem:[#allocation5 + $0x1a0] sm:$0xff]
    %v117 = vld [vmem:[#allocation5 + $0x1a8] sm:$0xff]
    %v118 = vld [vmem:[#allocation5 + $0x1b0] sm:$0xff]
    %v119 = vld [vmem:[#allocation5 + $0x1b8] sm:$0xff]
    %v120 = vld [vmem:[#allocation5 + $0x1c0] sm:$0xff]
    %v121 = vld [vmem:[#allocation5 + $0x1c8] sm:$0xff]
    %v122 = vld [vmem:[#allocation5 + $0x1d0] sm:$0xff]
    %v123 = vld [vmem:[#allocation5 + $0x1d8] sm:$0xff]
    %v124 = vld [vmem:[#allocation5 + $0x1e0] sm:$0xff]
    %v125 = vld [vmem:[#allocation5 + $0x1e8] sm:$0xff]
    %v126 = vld [vmem:[#allocation5 + $0x1f0] sm:$0xff]
    %v127 = vld [vmem:[#allocation5 + $0x1f8] sm:$0xff]
    %v128 = vld [vmem:[#allocation5 + $0x200] sm:$0xff]
    %v129 = vld [vmem:[#allocation5 + $0x208] sm:$0xff]
    %v130 = vld [vmem:[#allocation5 + $0x210] sm:$0xff]
    %v131 = vld [vmem:[#allocation5 + $0x218] sm:$0xff]
    %v132 = vld [vmem:[#allocation5 + $0x220] sm:$0xff]
    %v133 = vld [vmem:[#allocation5 + $0x228] sm:$0xff]
    %v134 = vld [vmem:[#allocation5 + $0x230] sm:$0xff]
    %v135 = vld [vmem:[#allocation5 + $0x238] sm:$0xff]
    %v136 = vld [vmem:[#allocation5 + $0x240] sm:$0xff]
    %v137 = vld [vmem:[#allocation5 + $0x248] sm:$0xff]
    %v138 = vld [vmem:[#allocation5 + $0x250] sm:$0xff]
    %v139 = vld [vmem:[#allocation5 + $0x258] sm:$0xff]
    %v140 = vld [vmem:[#allocation5 + $0x260] sm:$0xff]
    %v141 = vld [vmem:[#allocation5 + $0x268] sm:$0xff]
    %v142 = vld [vmem:[#allocation5 + $0x270] sm:$0xff]
    %v143 = vld [vmem:[#allocation5 + $0x278] sm:$0xff]
    %v144 = vld [vmem:[#allocation5 + $0x280] sm:$0xff]
    %v145 = vld [vmem:[#allocation5 + $0x288] sm:$0xff]
    %v146 = vld [vmem:[#allocation5 + $0x290] sm:$0xff]
    %v147 = vld [vmem:[#allocation5 + $0x298] sm:$0xff]
    %v148 = vld [vmem:[#allocation5 + $0x2a0] sm:$0xff]
    %v149 = vld [vmem:[#allocation5 + $0x2a8] sm:$0xff]
    %v150 = vld [vmem:[#allocation5 + $0x2b0] sm:$0xff]
    %v151 = vld [vmem:[#allocation5 + $0x2b8] sm:$0xff]
    %v152 = vld [vmem:[#allocation5 + $0x2c0] sm:$0xff]
    %v153 = vld [vmem:[#allocation5 + $0x2c8] sm:$0xff]
    %v154 = vld [vmem:[#allocation5 + $0x2d0] sm:$0xff]
    %v155 = vld [vmem:[#allocation5 + $0x2d8] sm:$0xff]
    %v156 = vld [vmem:[#allocation5 + $0x2e0] sm:$0xff]
    %v157 = vld [vmem:[#allocation5 + $0x2e8] sm:$0xff]
    %v158 = vld [vmem:[#allocation5 + $0x2f0] sm:$0xff]
    %v159 = vld [vmem:[#allocation5 + $0x2f8] sm:$0xff]
    %v160 = vld [vmem:[#allocation7] sm:$0x3f]
    %v162 = vperm.slane %v160, 0
    %v163 = vperm.slane %v160, 1
    %v164 = vperm.slane %v160, 2
    %v165 = vperm.slane %v160, 3
    %v166 = vperm.slane %v160, 4
    %v167 = vperm.slane %v160, 5
    %v178 = vunpack.c.l.b16 %v60
    %v179 = vunpack.c.h.b16 %v60
    %v180 = vunpack.c.l.b16 %v61
    %v181 = vunpack.c.h.b16 %v61
    %v182 = vunpack.c.l.b16 %v62
    %v183 = vunpack.c.h.b16 %v62
    %v184 = vunpack.c.l.b16 %v63
    %v185 = vunpack.c.h.b16 %v63
    %v186 = vpack.c.b16 %v180, %v178
    %v187 = vpack.c.b16 %v181, %v179
    %v188 = vpack.c.b16 %v184, %v182
    %v189 = vpack.c.b16 %v185, %v183
    %v290 = vunpack.c.l.b16 %v64
    %v291 = vunpack.c.h.b16 %v64
    %v292 = vunpack.c.l.b16 %v65
    %v293 = vunpack.c.h.b16 %v65
    %v294 = vunpack.c.l.b16 %v66
    %v295 = vunpack.c.h.b16 %v66
    %v296 = vunpack.c.l.b16 %v67
    %v297 = vunpack.c.h.b16 %v67
    %v298 = vunpack.c.l.b16 %v68
    %v299 = vunpack.c.h.b16 %v68
    %v300 = vunpack.c.l.b16 %v69
    %v301 = vunpack.c.h.b16 %v69
    %v302 = vunpack.c.l.b16 %v70
    %v303 = vunpack.c.h.b16 %v70
    %v304 = vunpack.c.l.b16 %v71
    %v305 = vunpack.c.h.b16 %v71
    %v306 = vunpack.c.l.b16 %v72
    %v307 = vunpack.c.h.b16 %v72
    %v308 = vunpack.c.l.b16 %v73
    %v309 = vunpack.c.h.b16 %v73
    %v310 = vunpack.c.l.b16 %v74
    %v311 = vunpack.c.h.b16 %v74
    %v312 = vunpack.c.l.b16 %v75
    %v313 = vunpack.c.h.b16 %v75
    %v314 = vunpack.c.l.b16 %v76
    %v315 = vunpack.c.h.b16 %v76
    %v316 = vunpack.c.l.b16 %v77
    %v317 = vunpack.c.h.b16 %v77
    %v318 = vunpack.c.l.b16 %v78
    %v319 = vunpack.c.h.b16 %v78
    %v320 = vunpack.c.l.b16 %v79
    %v321 = vunpack.c.h.b16 %v79
    %v322 = vunpack.c.l.b16 %v80
    %v323 = vunpack.c.h.b16 %v80
    %v324 = vunpack.c.l.b16 %v81
    %v325 = vunpack.c.h.b16 %v81
    %v326 = vunpack.c.l.b16 %v82
    %v327 = vunpack.c.h.b16 %v82
    %v328 = vunpack.c.l.b16 %v83
    %v329 = vunpack.c.h.b16 %v83
    %v330 = vunpack.c.l.b16 %v84
    %v331 = vunpack.c.h.b16 %v84
    %v332 = vunpack.c.l.b16 %v85
    %v333 = vunpack.c.h.b16 %v85
    %v334 = vunpack.c.l.b16 %v86
    %v335 = vunpack.c.h.b16 %v86
    %v336 = vunpack.c.l.b16 %v87
    %v337 = vunpack.c.h.b16 %v87
    %v338 = vunpack.c.l.b16 %v88
    %v339 = vunpack.c.h.b16 %v88
    %v340 = vunpack.c.l.b16 %v89
    %v341 = vunpack.c.h.b16 %v89
    %v342 = vunpack.c.l.b16 %v90
    %v343 = vunpack.c.h.b16 %v90
    %v344 = vunpack.c.l.b16 %v91
    %v345 = vunpack.c.h.b16 %v91
    %v346 = vunpack.c.l.b16 %v92
    %v347 = vunpack.c.h.b16 %v92
    %v348 = vunpack.c.l.b16 %v93
    %v349 = vunpack.c.h.b16 %v93
    %v350 = vunpack.c.l.b16 %v94
    %v351 = vunpack.c.h.b16 %v94
    %v352 = vunpack.c.l.b16 %v95
    %v353 = vunpack.c.h.b16 %v95
    %v354 = vunpack.c.l.b16 %v96
    %v355 = vunpack.c.h.b16 %v96
    %v356 = vunpack.c.l.b16 %v97
    %v357 = vunpack.c.h.b16 %v97
    %v358 = vunpack.c.l.b16 %v98
    %v359 = vunpack.c.h.b16 %v98
    %v360 = vunpack.c.l.b16 %v99
    %v361 = vunpack.c.h.b16 %v99
    %v362 = vunpack.c.l.b16 %v100
    %v363 = vunpack.c.h.b16 %v100
    %v364 = vunpack.c.l.b16 %v101
    %v365 = vunpack.c.h.b16 %v101
    %v366 = vunpack.c.l.b16 %v102
    %v367 = vunpack.c.h.b16 %v102
    %v368 = vunpack.c.l.b16 %v103
    %v369 = vunpack.c.h.b16 %v103
    %v370 = vunpack.c.l.b16 %v104
    %v371 = vunpack.c.h.b16 %v104
    %v372 = vunpack.c.l.b16 %v105
    %v373 = vunpack.c.h.b16 %v105
    %v374 = vunpack.c.l.b16 %v106
    %v375 = vunpack.c.h.b16 %v106
    %v376 = vunpack.c.l.b16 %v107
    %v377 = vunpack.c.h.b16 %v107
    %v378 = vunpack.c.l.b16 %v108
    %v379 = vunpack.c.h.b16 %v108
    %v380 = vunpack.c.l.b16 %v109
    %v381 = vunpack.c.h.b16 %v109
    %v382 = vunpack.c.l.b16 %v110
    %v383 = vunpack.c.h.b16 %v110
    %v384 = vunpack.c.l.b16 %v111
    %v385 = vunpack.c.h.b16 %v111
    %v386 = vunpack.c.l.b16 %v112
    %v387 = vunpack.c.h.b16 %v112
    %v388 = vunpack.c.l.b16 %v113
    %v389 = vunpack.c.h.b16 %v113
    %v390 = vunpack.c.l.b16 %v114
    %v391 = vunpack.c.h.b16 %v114
    %v392 = vunpack.c.l.b16 %v115
    %v393 = vunpack.c.h.b16 %v115
    %v394 = vunpack.c.l.b16 %v116
    %v395 = vunpack.c.h.b16 %v116
    %v396 = vunpack.c.l.b16 %v117
    %v397 = vunpack.c.h.b16 %v117
    %v398 = vunpack.c.l.b16 %v118
    %v399 = vunpack.c.h.b16 %v118
    %v400 = vunpack.c.l.b16 %v119
    %v401 = vunpack.c.h.b16 %v119
    %v402 = vunpack.c.l.b16 %v120
    %v403 = vunpack.c.h.b16 %v120
    %v404 = vunpack.c.l.b16 %v121
    %v405 = vunpack.c.h.b16 %v121
    %v406 = vunpack.c.l.b16 %v122
    %v407 = vunpack.c.h.b16 %v122
    %v408 = vunpack.c.l.b16 %v123
    %v409 = vunpack.c.h.b16 %v123
    %v410 = vunpack.c.l.b16 %v124
    %v411 = vunpack.c.h.b16 %v124
    %v412 = vunpack.c.l.b16 %v125
    %v413 = vunpack.c.h.b16 %v125
    %v414 = vunpack.c.l.b16 %v126
    %v415 = vunpack.c.h.b16 %v126
    %v416 = vunpack.c.l.b16 %v127
    %v417 = vunpack.c.h.b16 %v127
    %v418 = vunpack.c.l.b16 %v128
    %v419 = vunpack.c.h.b16 %v128
    %v420 = vunpack.c.l.b16 %v129
    %v421 = vunpack.c.h.b16 %v129
    %v422 = vunpack.c.l.b16 %v130
    %v423 = vunpack.c.h.b16 %v130
    %v424 = vunpack.c.l.b16 %v131
    %v425 = vunpack.c.h.b16 %v131
    %v426 = vunpack.c.l.b16 %v132
    %v427 = vunpack.c.h.b16 %v132
    %v428 = vunpack.c.l.b16 %v133
    %v429 = vunpack.c.h.b16 %v133
    %v430 = vunpack.c.l.b16 %v134
    %v431 = vunpack.c.h.b16 %v134
    %v432 = vunpack.c.l.b16 %v135
    %v433 = vunpack.c.h.b16 %v135
    %v434 = vunpack.c.l.b16 %v136
    %v435 = vunpack.c.h.b16 %v136
    %v436 = vunpack.c.l.b16 %v137
    %v437 = vunpack.c.h.b16 %v137
    %v438 = vunpack.c.l.b16 %v138
    %v439 = vunpack.c.h.b16 %v138
    %v440 = vunpack.c.l.b16 %v139
    %v441 = vunpack.c.h.b16 %v139
    %v442 = vunpack.c.l.b16 %v140
    %v443 = vunpack.c.h.b16 %v140
    %v444 = vunpack.c.l.b16 %v141
    %v445 = vunpack.c.h.b16 %v141
    %v446 = vunpack.c.l.b16 %v142
    %v447 = vunpack.c.h.b16 %v142
    %v448 = vunpack.c.l.b16 %v143
    %v449 = vunpack.c.h.b16 %v143
    %v450 = vunpack.c.l.b16 %v144
    %v451 = vunpack.c.h.b16 %v144
    %v452 = vunpack.c.l.b16 %v145
    %v453 = vunpack.c.h.b16 %v145
    %v454 = vunpack.c.l.b16 %v146
    %v455 = vunpack.c.h.b16 %v146
    %v456 = vunpack.c.l.b16 %v147
    %v457 = vunpack.c.h.b16 %v147
    %v458 = vunpack.c.l.b16 %v148
    %v459 = vunpack.c.h.b16 %v148
    %v460 = vunpack.c.l.b16 %v149
    %v461 = vunpack.c.h.b16 %v149
    %v462 = vunpack.c.l.b16 %v150
    %v463 = vunpack.c.h.b16 %v150
    %v464 = vunpack.c.l.b16 %v151
    %v465 = vunpack.c.h.b16 %v151
    %v466 = vunpack.c.l.b16 %v152
    %v467 = vunpack.c.h.b16 %v152
    %v468 = vunpack.c.l.b16 %v153
    %v469 = vunpack.c.h.b16 %v153
    %v470 = vunpack.c.l.b16 %v154
    %v471 = vunpack.c.h.b16 %v154
    %v472 = vunpack.c.l.b16 %v155
    %v473 = vunpack.c.h.b16 %v155
    %v474 = vunpack.c.l.b16 %v156
    %v475 = vunpack.c.h.b16 %v156
    %v476 = vunpack.c.l.b16 %v157
    %v477 = vunpack.c.h.b16 %v157
    %v478 = vunpack.c.l.b16 %v158
    %v479 = vunpack.c.h.b16 %v158
    %v480 = vunpack.c.l.b16 %v159
    %v481 = vunpack.c.h.b16 %v159
    %v482 = vpack.c.b16 %v296, %v290
    %v483 = vpack.c.b16 %v297, %v291
    %v484 = vpack.c.b16 %v298, %v292
    %v485 = vpack.c.b16 %v299, %v293
    %v486 = vpack.c.b16 %v300, %v294
    %v487 = vpack.c.b16 %v301, %v295
    %v488 = vpack.c.b16 %v308, %v302
    %v489 = vpack.c.b16 %v309, %v303
    %v490 = vpack.c.b16 %v310, %v304
    %v491 = vpack.c.b16 %v311, %v305
    %v492 = vpack.c.b16 %v312, %v306
    %v493 = vpack.c.b16 %v313, %v307
    %v494 = vpack.c.b16 %v320, %v314
    %v495 = vpack.c.b16 %v321, %v315
    %v496 = vpack.c.b16 %v322, %v316
    %v497 = vpack.c.b16 %v323, %v317
    %v498 = vpack.c.b16 %v324, %v318
    %v499 = vpack.c.b16 %v325, %v319
    %v500 = vpack.c.b16 %v332, %v326
    %v501 = vpack.c.b16 %v333, %v327
    %v502 = vpack.c.b16 %v334, %v328
    %v503 = vpack.c.b16 %v335, %v329
    %v504 = vpack.c.b16 %v336, %v330
    %v505 = vpack.c.b16 %v337, %v331
    %v506 = vpack.c.b16 %v344, %v338
    %v507 = vpack.c.b16 %v345, %v339
    %v508 = vpack.c.b16 %v346, %v340
    %v509 = vpack.c.b16 %v347, %v341
    %v510 = vpack.c.b16 %v348, %v342
    %v511 = vpack.c.b16 %v349, %v343
    %v512 = vpack.c.b16 %v356, %v350
    %v513 = vpack.c.b16 %v357, %v351
    %v514 = vpack.c.b16 %v358, %v352
    %v515 = vpack.c.b16 %v359, %v353
    %v516 = vpack.c.b16 %v360, %v354
    %v517 = vpack.c.b16 %v361, %v355
    %v518 = vpack.c.b16 %v368, %v362
    %v519 = vpack.c.b16 %v369, %v363
    %v520 = vpack.c.b16 %v370, %v364
    %v521 = vpack.c.b16 %v371, %v365
    %v522 = vpack.c.b16 %v372, %v366
    %v523 = vpack.c.b16 %v373, %v367
    %v524 = vpack.c.b16 %v380, %v374
    %v525 = vpack.c.b16 %v381, %v375
    %v526 = vpack.c.b16 %v382, %v376
    %v527 = vpack.c.b16 %v383, %v377
    %v528 = vpack.c.b16 %v384, %v378
    %v529 = vpack.c.b16 %v385, %v379
    %v530 = vpack.c.b16 %v392, %v386
    %v531 = vpack.c.b16 %v393, %v387
    %v532 = vpack.c.b16 %v394, %v388
    %v533 = vpack.c.b16 %v395, %v389
    %v534 = vpack.c.b16 %v396, %v390
    %v535 = vpack.c.b16 %v397, %v391
    %v536 = vpack.c.b16 %v404, %v398
    %v537 = vpack.c.b16 %v405, %v399
    %v538 = vpack.c.b16 %v406, %v400
    %v539 = vpack.c.b16 %v407, %v401
    %v540 = vpack.c.b16 %v408, %v402
    %v541 = vpack.c.b16 %v409, %v403
    %v542 = vpack.c.b16 %v416, %v410
    %v543 = vpack.c.b16 %v417, %v411
    %v544 = vpack.c.b16 %v418, %v412
    %v545 = vpack.c.b16 %v419, %v413
    %v546 = vpack.c.b16 %v420, %v414
    %v547 = vpack.c.b16 %v421, %v415
    %v548 = vpack.c.b16 %v428, %v422
    %v549 = vpack.c.b16 %v429, %v423
    %v550 = vpack.c.b16 %v430, %v424
    %v551 = vpack.c.b16 %v431, %v425
    %v552 = vpack.c.b16 %v432, %v426
    %v553 = vpack.c.b16 %v433, %v427
    %v554 = vpack.c.b16 %v440, %v434
    %v555 = vpack.c.b16 %v441, %v435
    %v556 = vpack.c.b16 %v442, %v436
    %v557 = vpack.c.b16 %v443, %v437
    %v558 = vpack.c.b16 %v444, %v438
    %v559 = vpack.c.b16 %v445, %v439
    %v560 = vpack.c.b16 %v452, %v446
    %v561 = vpack.c.b16 %v453, %v447
    %v562 = vpack.c.b16 %v454, %v448
    %v563 = vpack.c.b16 %v455, %v449
    %v564 = vpack.c.b16 %v456, %v450
    %v565 = vpack.c.b16 %v457, %v451
    %v566 = vpack.c.b16 %v464, %v458
    %v567 = vpack.c.b16 %v465, %v459
    %v568 = vpack.c.b16 %v466, %v460
    %v569 = vpack.c.b16 %v467, %v461
    %v570 = vpack.c.b16 %v468, %v462
    %v571 = vpack.c.b16 %v469, %v463
    %v572 = vpack.c.b16 %v476, %v470
    %v573 = vpack.c.b16 %v477, %v471
    %v574 = vpack.c.b16 %v478, %v472
    %v575 = vpack.c.b16 %v479, %v473
    %v576 = vpack.c.b16 %v480, %v474
    %v577 = vpack.c.b16 %v481, %v475
    %674 = vmatpush.bf16.msra.mxu0 %v524
    %675 = vmatpush.bf16.msra.mxu0 %v518
    %676 = vmatpush.bf16.msra.mxu0 %v512
    %677 = vmatpush.bf16.msra.mxu0 %v506
    %678 = vmatpush.bf16.msra.mxu0 %v500
    %679 = vmatpush.bf16.msra.mxu0 %v494
    %680 = vmatpush.bf16.msra.mxu0 %v488
    %681 = vmatpush.bf16.msra.mxu0 %v482
    %682 = vmatmul.bf16.gmra.mxu0 %v186
    %v683 = vpop.f32.mrf.mxu0
    %v684 = vadd.f32 %v162, %v683
    %v685 = vpop.f32.mrf.mxu0
    %v686 = vadd.f32 %v162, %v685
    %687 = vmatmul.bf16.gmra.mxu0 %v188
    %v688 = vpop.f32.mrf.mxu0
    %v689 = vadd.f32 %v162, %v688
    %v690 = vpop.f32.mrf.mxu0
    %v691 = vadd.f32 %v162, %v690
    %692 = vdwg.mxu0
    %693 = vmatpush.bf16.msra.mxu0 %v572
    %694 = vmatpush.bf16.msra.mxu0 %v566
    %695 = vmatpush.bf16.msra.mxu0 %v560
    %696 = vmatpush.bf16.msra.mxu0 %v554
    %697 = vmatpush.bf16.msra.mxu0 %v548
    %698 = vmatpush.bf16.msra.mxu0 %v542
    %699 = vmatpush.bf16.msra.mxu0 %v536
    %700 = vmatpush.bf16.msra.mxu0 %v530
    %701 = vmatmul.bf16.gmra.mxu0 %v187
    %v702 = vpop.f32.mrf.mxu0
    %v703 = vadd.f32 %v684, %v702
    %v704 = vpop.f32.mrf.mxu0
    %v705 = vadd.f32 %v686, %v704
    %706 = vmatmul.bf16.gmra.mxu0 %v189
    %v707 = vpop.f32.mrf.mxu0
    %v708 = vadd.f32 %v689, %v707
    %v709 = vpop.f32.mrf.mxu0
    %v710 = vadd.f32 %v691, %v709
    %711 = vdwg.mxu0
    %712 = vmatpush.bf16.msra.mxu0 %v525
    %713 = vmatpush.bf16.msra.mxu0 %v519
    %714 = vmatpush.bf16.msra.mxu0 %v513
    %715 = vmatpush.bf16.msra.mxu0 %v507
    %716 = vmatpush.bf16.msra.mxu0 %v501
    %717 = vmatpush.bf16.msra.mxu0 %v495
    %718 = vmatpush.bf16.msra.mxu0 %v489
    %719 = vmatpush.bf16.msra.mxu0 %v483
    %720 = vmatmul.bf16.gmra.mxu0 %v186
    %v721 = vpop.f32.mrf.mxu0
    %v722 = vadd.f32 %v163, %v721
    %v723 = vpop.f32.mrf.mxu0
    %v724 = vadd.f32 %v163, %v723
    %725 = vmatmul.bf16.gmra.mxu0 %v188
    %v726 = vpop.f32.mrf.mxu0
    %v727 = vadd.f32 %v163, %v726
    %v728 = vpop.f32.mrf.mxu0
    %v729 = vadd.f32 %v163, %v728
    %730 = vdwg.mxu0
    %731 = vmatpush.bf16.msra.mxu0 %v573
    %732 = vmatpush.bf16.msra.mxu0 %v567
    %733 = vmatpush.bf16.msra.mxu0 %v561
    %734 = vmatpush.bf16.msra.mxu0 %v555
    %735 = vmatpush.bf16.msra.mxu0 %v549
    %736 = vmatpush.bf16.msra.mxu0 %v543
    %737 = vmatpush.bf16.msra.mxu0 %v537
    %738 = vmatpush.bf16.msra.mxu0 %v531
    %739 = vmatmul.bf16.gmra.mxu0 %v187
    %v740 = vpop.f32.mrf.mxu0
    %v741 = vadd.f32 %v722, %v740
    %v742 = vpop.f32.mrf.mxu0
    %v743 = vadd.f32 %v724, %v742
    %744 = vmatmul.bf16.gmra.mxu0 %v189
    %v745 = vpop.f32.mrf.mxu0
    %v746 = vadd.f32 %v727, %v745
    %v747 = vpop.f32.mrf.mxu0
    %v748 = vadd.f32 %v729, %v747
    %749 = vdwg.mxu0
    %750 = vmatpush.bf16.msra.mxu0 %v526
    %751 = vmatpush.bf16.msra.mxu0 %v520
    %752 = vmatpush.bf16.msra.mxu0 %v514
    %753 = vmatpush.bf16.msra.mxu0 %v508
    %754 = vmatpush.bf16.msra.mxu0 %v502
    %755 = vmatpush.bf16.msra.mxu0 %v496
    %756 = vmatpush.bf16.msra.mxu0 %v490
    %757 = vmatpush.bf16.msra.mxu0 %v484
    %758 = vmatmul.bf16.gmra.mxu0 %v186
    %v759 = vpop.f32.mrf.mxu0
    %v760 = vadd.f32 %v164, %v759
    %v761 = vpop.f32.mrf.mxu0
    %v762 = vadd.f32 %v164, %v761
    %763 = vmatmul.bf16.gmra.mxu0 %v188
    %v764 = vpop.f32.mrf.mxu0
    %v765 = vadd.f32 %v164, %v764
    %v766 = vpop.f32.mrf.mxu0
    %v767 = vadd.f32 %v164, %v766
    %768 = vdwg.mxu0
    %769 = vmatpush.bf16.msra.mxu0 %v574
    %770 = vmatpush.bf16.msra.mxu0 %v568
    %771 = vmatpush.bf16.msra.mxu0 %v562
    %772 = vmatpush.bf16.msra.mxu0 %v556
    %773 = vmatpush.bf16.msra.mxu0 %v550
    %774 = vmatpush.bf16.msra.mxu0 %v544
    %775 = vmatpush.bf16.msra.mxu0 %v538
    %776 = vmatpush.bf16.msra.mxu0 %v532
    %777 = vmatmul.bf16.gmra.mxu0 %v187
    %v778 = vpop.f32.mrf.mxu0
    %v779 = vadd.f32 %v760, %v778
    %v780 = vpop.f32.mrf.mxu0
    %v781 = vadd.f32 %v762, %v780
    %782 = vmatmul.bf16.gmra.mxu0 %v189
    %v783 = vpop.f32.mrf.mxu0
    %v784 = vadd.f32 %v765, %v783
    %v785 = vpop.f32.mrf.mxu0
    %v786 = vadd.f32 %v767, %v785
    %787 = vdwg.mxu0
    %788 = vmatpush.bf16.msra.mxu0 %v527
    %789 = vmatpush.bf16.msra.mxu0 %v521
    %790 = vmatpush.bf16.msra.mxu0 %v515
    %791 = vmatpush.bf16.msra.mxu0 %v509
    %792 = vmatpush.bf16.msra.mxu0 %v503
    %793 = vmatpush.bf16.msra.mxu0 %v497
    %794 = vmatpush.bf16.msra.mxu0 %v491
    %795 = vmatpush.bf16.msra.mxu0 %v485
    %796 = vmatmul.bf16.gmra.mxu0 %v186
    %v797 = vpop.f32.mrf.mxu0
    %v798 = vadd.f32 %v165, %v797
    %v799 = vpop.f32.mrf.mxu0
    %v800 = vadd.f32 %v165, %v799
    %801 = vmatmul.bf16.gmra.mxu0 %v188
    %v802 = vpop.f32.mrf.mxu0
    %v803 = vadd.f32 %v165, %v802
    %v804 = vpop.f32.mrf.mxu0
    %v805 = vadd.f32 %v165, %v804
    %806 = vdwg.mxu0
    %807 = vmatpush.bf16.msra.mxu0 %v575
    %808 = vmatpush.bf16.msra.mxu0 %v569
    %809 = vmatpush.bf16.msra.mxu0 %v563
    %810 = vmatpush.bf16.msra.mxu0 %v557
    %811 = vmatpush.bf16.msra.mxu0 %v551
    %812 = vmatpush.bf16.msra.mxu0 %v545
    %813 = vmatpush.bf16.msra.mxu0 %v539
    %814 = vmatpush.bf16.msra.mxu0 %v533
    %815 = vmatmul.bf16.gmra.mxu0 %v187
    %v816 = vpop.f32.mrf.mxu0
    %v817 = vadd.f32 %v798, %v816
    %v818 = vpop.f32.mrf.mxu0
    %v819 = vadd.f32 %v800, %v818
    %820 = vmatmul.bf16.gmra.mxu0 %v189
    %v821 = vpop.f32.mrf.mxu0
    %v822 = vadd.f32 %v803, %v821
    %v823 = vpop.f32.mrf.mxu0
    %v824 = vadd.f32 %v805, %v823
    %825 = vdwg.mxu0
    %826 = vmatpush.bf16.msra.mxu0 %v528
    %827 = vmatpush.bf16.msra.mxu0 %v522
    %828 = vmatpush.bf16.msra.mxu0 %v516
    %829 = vmatpush.bf16.msra.mxu0 %v510
    %830 = vmatpush.bf16.msra.mxu0 %v504
    %831 = vmatpush.bf16.msra.mxu0 %v498
    %832 = vmatpush.bf16.msra.mxu0 %v492
    %833 = vmatpush.bf16.msra.mxu0 %v486
    %834 = vmatmul.bf16.gmra.mxu0 %v186
    %v835 = vpop.f32.mrf.mxu0
    %v836 = vadd.f32 %v166, %v835
    %v837 = vpop.f32.mrf.mxu0
    %v838 = vadd.f32 %v166, %v837
    %839 = vmatmul.bf16.gmra.mxu0 %v188
    %v840 = vpop.f32.mrf.mxu0
    %v841 = vadd.f32 %v166, %v840
    %v842 = vpop.f32.mrf.mxu0
    %v843 = vadd.f32 %v166, %v842
    %844 = vdwg.mxu0
    %845 = vmatpush.bf16.msra.mxu0 %v576
    %846 = vmatpush.bf16.msra.mxu0 %v570
    %847 = vmatpush.bf16.msra.mxu0 %v564
    %848 = vmatpush.bf16.msra.mxu0 %v558
    %849 = vmatpush.bf16.msra.mxu0 %v552
    %850 = vmatpush.bf16.msra.mxu0 %v546
    %851 = vmatpush.bf16.msra.mxu0 %v540
    %852 = vmatpush.bf16.msra.mxu0 %v534
    %853 = vmatmul.bf16.gmra.mxu0 %v187
    %v854 = vpop.f32.mrf.mxu0
    %v855 = vadd.f32 %v836, %v854
    %v856 = vpop.f32.mrf.mxu0
    %v857 = vadd.f32 %v838, %v856
    %858 = vmatmul.bf16.gmra.mxu0 %v189
    %v859 = vpop.f32.mrf.mxu0
    %v860 = vadd.f32 %v841, %v859
    %v861 = vpop.f32.mrf.mxu0
    %v862 = vadd.f32 %v843, %v861
    %863 = vdwg.mxu0
    %864 = vmatpush.bf16.msra.mxu0 %v529
    %865 = vmatpush.bf16.msra.mxu0 %v523
    %866 = vmatpush.bf16.msra.mxu0 %v517
    %867 = vmatpush.bf16.msra.mxu0 %v511
    %868 = vmatpush.bf16.msra.mxu0 %v505
    %869 = vmatpush.bf16.msra.mxu0 %v499
    %870 = vmatpush.bf16.msra.mxu0 %v493
    %871 = vmatpush.bf16.msra.mxu0 %v487
    %872 = vmatmul.bf16.gmra.mxu0 %v186
    %v873 = vpop.f32.mrf.mxu0
    %v874 = vadd.f32 %v167, %v873
    %v875 = vpop.f32.mrf.mxu0
    %v876 = vadd.f32 %v167, %v875
    %877 = vmatmul.bf16.gmra.mxu0 %v188
    %v878 = vpop.f32.mrf.mxu0
    %v879 = vadd.f32 %v167, %v878
    %v880 = vpop.f32.mrf.mxu0
    %v881 = vadd.f32 %v167, %v880
    %882 = vdwg.mxu0
    %883 = vmatpush.bf16.msra.mxu0 %v577
    %884 = vmatpush.bf16.msra.mxu0 %v571
    %885 = vmatpush.bf16.msra.mxu0 %v565
    %886 = vmatpush.bf16.msra.mxu0 %v559
    %887 = vmatpush.bf16.msra.mxu0 %v553
    %888 = vmatpush.bf16.msra.mxu0 %v547
    %889 = vmatpush.bf16.msra.mxu0 %v541
    %890 = vmatpush.bf16.msra.mxu0 %v535
    %891 = vmatmul.bf16.gmra.mxu0 %v187
    %v892 = vpop.f32.mrf.mxu0
    %v893 = vadd.f32 %v874, %v892
    %v894 = vpop.f32.mrf.mxu0
    %v895 = vadd.f32 %v876, %v894
    %896 = vmatmul.bf16.gmra.mxu0 %v189
    %v897 = vpop.f32.mrf.mxu0
    %v898 = vadd.f32 %v879, %v897
    %v899 = vpop.f32.mrf.mxu0
    %v900 = vadd.f32 %v881, %v899
    %901 = vdwg.mxu0
    %v902 = vpack.c.bf16 %v741, %v703
    %v903 = vpack.c.bf16 %v817, %v779
    %v904 = vpack.c.bf16 %v893, %v855
    %v905 = vpack.c.bf16 %v743, %v705
    %v906 = vpack.c.bf16 %v819, %v781
    %v907 = vpack.c.bf16 %v895, %v857
    %v908 = vpack.c.bf16 %v746, %v708
    %v909 = vpack.c.bf16 %v822, %v784
    %v910 = vpack.c.bf16 %v898, %v860
    %v911 = vpack.c.bf16 %v748, %v710
    %v912 = vpack.c.bf16 %v824, %v786
    %v913 = vpack.c.bf16 %v900, %v862
    %914 = vst [vmem:[#allocation8] sm:$0xff] %v902
    %915 = vst [vmem:[#allocation8 + $0x8] sm:$0xff] %v903
    %916 = vst [vmem:[#allocation8 + $0x10] sm:$0xff] %v904
    %917 = vst [vmem:[#allocation8 + $0x18] sm:$0xff] %v905
    %918 = vst [vmem:[#allocation8 + $0x20] sm:$0xff] %v906
    %919 = vst [vmem:[#allocation8 + $0x28] sm:$0xff] %v907
    %920 = vst [vmem:[#allocation8 + $0x30] sm:$0xff] %v908
    %921 = vst [vmem:[#allocation8 + $0x38] sm:$0xff] %v909
    %922 = vst [vmem:[#allocation8 + $0x40] sm:$0xff] %v910
    %923 = vst [vmem:[#allocation8 + $0x48] sm:$0xff] %v911
    %924 = vst [vmem:[#allocation8 + $0x50] sm:$0xff] %v912
    %925 = vst [vmem:[#allocation8 + $0x58] sm:$0xff] %v913
    // Predicated region
    $region26: #{tpu_custom_call.1} parent=1 // pred_check
      _
    $region27: #{tpu_custom_call.1} parent=1 // pred_check_branch
      %927 = sbr.rel (0) target = $region29
    $region28: #{tpu_custom_call.1} parent=1 // pred_region
      %929 = vsyncadd [#allocation4], 0
      %s930 = sshll.u32 [#allocation8], 4
      %s931 = int_to_ptr.vmem [resolvable:$true] %s930
      %s932 = sshll.u32 %s3, 4
      %s933 = int_to_ptr.hbm [resolvable:$true] %s932
      %938 = dma.vmem_to_hbm [thread:$0]  %s931, 1536, %s933, [#allocation4], 384, 384, 24
    $region29: #{tpu_custom_call.1} parent=1 // pred_fallthru
      _
    // Predicated region
    $region30: #{tpu_custom_call.1} parent=1 // pred_check
      _
    $region31: #{tpu_custom_call.1} parent=1 // pred_check_branch
      %940 = sbr.rel (0) target = $region33
    $region32: #{tpu_custom_call.1} parent=1 // pred_region
      %942 = dma.done [#allocation4], 1536
    $region33: #{tpu_custom_call.1} parent=1 // pred_fallthru
      _
    %943 = vsyncpa [#allocation3], 1
    %944 = vsyncpa [#allocation6], 1
    %945 = vsyncpa [#allocation4], 1

</llo_original>
